<compile_context>
chip_gen: v5e
topology: v5e:2x2
jax: 0.10.0
libtpu: 0.0.40
codegen_flags: <defaults>
</compile_context>

<pallas_src>
import functools

import jax
import jax.numpy as jnp
from jax.experimental import pallas as pl
from jax.experimental.pallas import tpu as pltpu


def _naive_attention_kernel(x_ref, w_ref, b_ref, out_ref, alpha_ref, g_scr,
                            *, c_a, tq, is_residual):
    # x_ref:     (1, C_in, N)   full batch element, channels-first (lane axis = N)
    # w_ref:     (2*C_a, C_in)  fused [Wg; Wh] 1x1-conv weight
    # b_ref:     (2*C_a, 1)     fused [bg; bh] bias (broadcasts over lanes)
    # out_ref:   (1, C_in, TQ)  relu(r) for this query tile (lane-dense store)
    # alpha_ref: (1, TQ, N)     softmax attention rows for this query tile
    # g_scr:     (C_a, N)       VMEM scratch so the query slice of g can be taken
    #                           with a ref dynamic slice (lane-aligned).
    q = pl.program_id(1)
    col0 = pl.multiple_of(q * tq, tq)

    x = x_ref[0]                                                    # (C_in, N)
    xf = x.astype(jnp.float32)

    # Fused 1x1-conv projections: one MXU matmul produces both g and h.
    gh = jnp.dot(w_ref[...], xf, preferred_element_type=jnp.float32) + b_ref[...]
    g_scr[...] = gh[:c_a, :]                                        # (C_a, N)
    h = gh[c_a:, :]                                                 # (C_a, N)
    g_q = g_scr[:, pl.ds(col0, tq)]                                 # (C_a, TQ)

    # scores for this query tile: s[i, j] = sum_c g[c, q0+i] * h[c, j]
    s = jax.lax.dot_general(g_q, h, (((0,), (0,)), ((), ())),
                            preferred_element_type=jnp.float32)     # (TQ, N)

    # softmax over last dim (dim=2 in the PyTorch code), exact f32
    m = jnp.max(s, axis=-1, keepdims=True)
    e = jnp.exp(s - m)
    alpha = e * pl.reciprocal(jnp.sum(e, axis=-1, keepdims=True), approx=False)

    # r[c, i] = sum_j alpha[i, j] * x[c, j]  ->  (C_in, TQ), lane-dense output
    r = jax.lax.dot_general(xf, alpha, (((1,), (1,)), ((), ())),
                            preferred_element_type=jnp.float32)     # (C_in, TQ)
    if is_residual:
        r = r + x_ref[0, :, pl.ds(col0, tq)].astype(jnp.float32)

    out_ref[0] = jnp.maximum(r, 0.0).astype(out_ref.dtype)
    alpha_ref[0] = alpha.astype(alpha_ref.dtype)


def naive_attention(x_nchw, wg, bg, wh, bh, *, is_residual=True):
    """x_nchw: (B, C_in, H, W) float32.  Returns (relu(r) NCHW, alpha (B,N,N))."""
    B, C_in, H, W = x_nchw.shape
    N = H * W
    C_a = wg.shape[0]

    # Query-tile size: multiple of 128 (lane width / MXU alignment), else full N.
    TQ = 128 if (N % 128 == 0 and N >= 128) else N
    n_q = N // TQ

    # Glue (all free reshapes — no transposes, no extra HBM passes):
    x_bcn = x_nchw.reshape(B, C_in, N)
    w_gh = jnp.concatenate([wg.reshape(C_a, C_in), wh.reshape(C_a, C_in)], axis=0)
    b_gh = jnp.concatenate([bg, bh]).reshape(2 * C_a, 1)

    kernel = functools.partial(_naive_attention_kernel,
                               c_a=C_a, tq=TQ, is_residual=is_residual)

    cost = pl.CostEstimate(
        flops=int(2 * B * N * N * (C_a + C_in)
                  + 2 * B * n_q * (2 * C_a) * C_in * N),
        transcendentals=int(B * N * N),
        bytes_accessed=int(4 * B * (2 * C_in * N + N * N)
                           + 4 * (2 * C_a * C_in + 2 * C_a)),
    )

    out_bcn, alpha = pl.pallas_call(
        kernel,
        out_shape=(
            jax.ShapeDtypeStruct((B, C_in, N), x_nchw.dtype),
            jax.ShapeDtypeStruct((B, N, N), jnp.float32),
        ),
        grid_spec=pltpu.PrefetchScalarGridSpec(
            num_scalar_prefetch=0,
            grid=(B, n_q),
            in_specs=[
                # x stays resident across the q axis (constant index along q).
                pl.BlockSpec((1, C_in, N), lambda b, q: (b, 0, 0)),
                pl.BlockSpec((2 * C_a, C_in), lambda b, q: (0, 0)),
                pl.BlockSpec((2 * C_a, 1), lambda b, q: (0, 0)),
            ],
            out_specs=[
                pl.BlockSpec((1, C_in, TQ), lambda b, q: (b, 0, q)),
                pl.BlockSpec((1, TQ, N), lambda b, q: (b, q, 0)),
            ],
            scratch_shapes=[pltpu.VMEM((C_a, N), jnp.float32)],
        ),
        compiler_params=pltpu.CompilerParams(
            dimension_semantics=("parallel", "parallel"),
            # Working set is tiny (<1 MiB for these shapes); cap explicitly so the
            # same tiling fits comfortably on v5e (16 MiB default) and v7x (64 MiB
            # physical VMEM).
            vmem_limit_bytes=32 * 1024 * 1024,
        ),
        cost_estimate=cost,
    )(x_bcn, w_gh, b_gh)

    # (B, C_in, N) -> NCHW is a free reshape (no transpose).
    return out_bcn.reshape(B, C_in, H, W), alpha


def _reference(x_nchw, wg, bg, wh, bh, *, is_residual=True):
    B, C_in, H, W = x_nchw.shape
    N = H * W
    C_a = wg.shape[0]
    xf = x_nchw.reshape(B, C_in, N)
    g = jnp.einsum("ac,bcn->ban", wg.reshape(C_a, C_in), xf) + bg[None, :, None]
    h = jnp.einsum("ac,bcn->ban", wh.reshape(C_a, C_in), xf) + bh[None, :, None]
    s = jnp.einsum("bci,bcj->bij", g, h)
    alpha = jax.nn.softmax(s, axis=-1)
    r = jnp.einsum("bij,bcj->bci", alpha, xf)             # (B, C_in, N)
    if is_residual:
        r = r + xf
    return jax.nn.relu(r).reshape(B, C_in, H, W), alpha


if __name__ == "__main__":
    # module config
    input_nf, atten_nf, is_residual = 4, 8, True
    B, H, W = 2, 16, 16

    key = jax.random.PRNGKey(0)
    kx, kwg, kbg, kwh, kbh = jax.random.split(key, 5)

    x = jax.random.normal(kx, (B, input_nf, H, W), dtype=jnp.float32)
    # Conv2d(input_nf, atten_nf, kernel_size=1) parameters
    wg = jax.random.normal(kwg, (atten_nf, input_nf, 1, 1), dtype=jnp.float32) * 0.2
    bg = jax.random.normal(kbg, (atten_nf,), dtype=jnp.float32) * 0.1
    wh = jax.random.normal(kwh, (atten_nf, input_nf, 1, 1), dtype=jnp.float32) * 0.2
    bh = jax.random.normal(kbh, (atten_nf,), dtype=jnp.float32) * 0.1

    r_out, alpha_out = naive_attention(x, wg, bg, wh, bh, is_residual=is_residual)
    jax.block_until_ready((r_out, alpha_out))

    r_ref, alpha_ref = _reference(x, wg, bg, wh, bh, is_residual=is_residual)
    assert jnp.allclose(r_out, r_ref, atol=1e-4, rtol=1e-4), \
        float(jnp.max(jnp.abs(r_out - r_ref)))
    assert jnp.allclose(alpha_out, alpha_ref, atol=2e-5, rtol=1e-4), \
        float(jnp.max(jnp.abs(alpha_out - alpha_ref)))

    print("KERNEL_OK")
</pallas_src>

<mosaic_0001>
module attributes {stable_mosaic.version = 11 : i64} {
  func.func @_naive_attention_kernel(%arg0: i32, %arg1: i32, %arg2: memref<1x4x256xf32, #tpu.memory_space<vmem>>, %arg3: memref<16x4xf32, #tpu.memory_space<vmem>>, %arg4: memref<16x1xf32, #tpu.memory_space<vmem>>, %arg5: memref<1x4x128xf32, #tpu.memory_space<vmem>>, %arg6: memref<1x128x256xf32, #tpu.memory_space<vmem>>, %arg7: memref<8x256xf32, #tpu.memory_space<vmem>>) attributes {dimension_semantics = [#tpu.dimension_semantics<parallel>, #tpu.dimension_semantics<parallel>], iteration_bounds = array<i64: 2, 2>, scalar_prefetch = 0 : i64, scratch_operands = 1 : i64, tpu.core_type = #tpu.core_type<tc>, window_params = [{transform_indices = @transform_0, window_bounds = array<i64: 1, 4, 256>}, {pipeline_mode = #tpu.pipeline_mode<synchronous>, transform_indices = @transform_1, window_bounds = array<i64: 16, 4>}, {pipeline_mode = #tpu.pipeline_mode<synchronous>, transform_indices = @transform_2, window_bounds = array<i64: 16, 1>}, {transform_indices = @transform_3, window_bounds = array<i64: 1, 4, 128>}, {transform_indices = @transform_4, window_bounds = array<i64: 1, 128, 256>}]} {
    %c128_i32 = arith.constant 128 : i32
    %0 = arith.muli %arg1, %c128_i32 : i32
    %1 = tpu.assume_multiple %0, 128 : i32
    %c0 = arith.constant 0 : index
    %c0_0 = arith.constant 0 : index
    %c0_1 = arith.constant 0 : index
    %2 = vector.load %arg2[%c0, %c0_0, %c0_1] : memref<1x4x256xf32, #tpu.memory_space<vmem>>, vector<1x4x256xf32>
    %3 = vector.shape_cast %2 : vector<1x4x256xf32> to vector<4x256xf32>
    %c0_2 = arith.constant 0 : index
    %c0_3 = arith.constant 0 : index
    %4 = vector.load %arg3[%c0_2, %c0_3] : memref<16x4xf32, #tpu.memory_space<vmem>>, vector<16x4xf32>
    %cst = arith.constant dense<0.000000e+00> : vector<16x256xf32>
    %5 = tpu.matmul %4, %3, %cst {dimension_numbers = #tpu.dot_dimension_numbers<[1], [0], [0], [1], [0, 0, 1, 1], [], []>} : vector<16x4xf32>, vector<4x256xf32>, vector<16x256xf32> -> vector<16x256xf32>
    %c0_4 = arith.constant 0 : index
    %c0_5 = arith.constant 0 : index
    %6 = vector.load %arg4[%c0_4, %c0_5] : memref<16x1xf32, #tpu.memory_space<vmem>>, vector<16x1xf32>
    %7 = vector.broadcast %6 : vector<16x1xf32> to vector<16x256xf32>
    %8 = arith.addf %5, %7 : vector<16x256xf32>
    %9 = vector.extract_strided_slice %8 {offsets = [0, 0], sizes = [8, 256], strides = [1, 1]} : vector<16x256xf32> to vector<8x256xf32>
    %c0_6 = arith.constant 0 : index
    %c0_7 = arith.constant 0 : index
    %10 = vector.load %arg7[%c0_6, %c0_7] : memref<8x256xf32, #tpu.memory_space<vmem>>, vector<8x256xf32>
    tpu.vector_store %arg7[%c0_6, %c0_7], %9 {strides = array<i32>} : memref<8x256xf32, #tpu.memory_space<vmem>>, vector<8x256xf32>,
    %11 = vector.extract_strided_slice %8 {offsets = [8, 0], sizes = [8, 256], strides = [1, 1]} : vector<16x256xf32> to vector<8x256xf32>
    %c0_8 = arith.constant 0 : index
    %12 = arith.index_cast %1 : i32 to index
    %13 = vector.load %arg7[%c0_8, %12] : memref<8x256xf32, #tpu.memory_space<vmem>>, vector<8x128xf32>
    %cst_9 = arith.constant dense<0.000000e+00> : vector<128x256xf32>
    %14 = tpu.matmul %13, %11, %cst_9 {dimension_numbers = #tpu.dot_dimension_numbers<[0], [0], [1], [1], [0, 1, 1, 1], [], []>} : vector<8x128xf32>, vector<8x256xf32>, vector<128x256xf32> -> vector<128x256xf32>
    %cst_10 = arith.constant dense<0xFF800000> : vector<128xf32>
    %15 = vector.multi_reduction <maximumf>, %14, %cst_10 [1] : vector<128x256xf32> to vector<128xf32>
    %16 = vector.shape_cast %15 : vector<128xf32> to vector<128x1xf32>
    %17 = vector.broadcast %16 : vector<128x1xf32> to vector<128x256xf32>
    %18 = arith.subf %14, %17 : vector<128x256xf32>
    %19 = math.exp %18 : vector<128x256xf32>
    %cst_11 = arith.constant dense<0.000000e+00> : vector<128xf32>
    %20 = vector.multi_reduction <add>, %19, %cst_11 [1] : vector<128x256xf32> to vector<128xf32>
    %21 = vector.shape_cast %20 : vector<128xf32> to vector<128x1xf32>
    %22 = tpu.reciprocal %21 : vector<128x1xf32> -> vector<128x1xf32>
    %23 = vector.broadcast %22 : vector<128x1xf32> to vector<128x256xf32>
    %24 = arith.mulf %19, %23 : vector<128x256xf32>
    %cst_12 = arith.constant dense<0.000000e+00> : vector<4x128xf32>
    %25 = tpu.matmul %3, %24, %cst_12 {dimension_numbers = #tpu.dot_dimension_numbers<[1], [1], [0], [0], [0, 0, 1, 0], [], []>} : vector<4x256xf32>, vector<128x256xf32>, vector<4x128xf32> -> vector<4x128xf32>
    %c0_13 = arith.constant 0 : index
    %c0_14 = arith.constant 0 : index
    %26 = arith.index_cast %1 : i32 to index
    %27 = vector.load %arg2[%c0_13, %c0_14, %26] : memref<1x4x256xf32, #tpu.memory_space<vmem>>, vector<1x4x128xf32>
    %28 = vector.shape_cast %27 : vector<1x4x128xf32> to vector<4x128xf32>
    %29 = arith.addf %25, %28 : vector<4x128xf32>
    %cst_15 = arith.constant 0.000000e+00 : f32
    %30 = vector.broadcast %cst_15 : f32 to vector<4x128xf32>
    %31 = arith.maximumf %29, %30 : vector<4x128xf32>
    %c0_16 = arith.constant 0 : index
    %c0_17 = arith.constant 0 : index
    %c0_18 = arith.constant 0 : index
    %32 = vector.load %arg5[%c0_16, %c0_17, %c0_18] : memref<1x4x128xf32, #tpu.memory_space<vmem>>, vector<1x4x128xf32>
    %33 = vector.shape_cast %32 : vector<1x4x128xf32> to vector<4x128xf32>
    %34 = vector.shape_cast %31 : vector<4x128xf32> to vector<1x4x128xf32>
    tpu.vector_store %arg5[%c0_16, %c0_17, %c0_18], %34 {strides = array<i32>} : memref<1x4x128xf32, #tpu.memory_space<vmem>>, vector<1x4x128xf32>,
    %c0_19 = arith.constant 0 : index
    %c0_20 = arith.constant 0 : index
    %c0_21 = arith.constant 0 : index
    %35 = vector.load %arg6[%c0_19, %c0_20, %c0_21] : memref<1x128x256xf32, #tpu.memory_space<vmem>>, vector<1x128x256xf32>
    %36 = vector.shape_cast %35 : vector<1x128x256xf32> to vector<128x256xf32>
    %37 = vector.shape_cast %24 : vector<128x256xf32> to vector<1x128x256xf32>
    tpu.vector_store %arg6[%c0_19, %c0_20, %c0_21], %37 {strides = array<i32>} : memref<1x128x256xf32, #tpu.memory_space<vmem>>, vector<1x128x256xf32>,
    return
  }
  func.func @transform_0(%arg0: i32, %arg1: i32) -> (i32, i32, i32) {
    %c0_i32 = arith.constant 0 : i32
    %c0_i32_0 = arith.constant 0 : i32
    %c0_i32_1 = arith.constant 0 : i32
    return %arg0, %c0_i32, %c0_i32_0 : i32, i32, i32
  }
  func.func @transform_1(%arg0: i32, %arg1: i32) -> (i32, i32) {
    %c0_i32 = arith.constant 0 : i32
    %c0_i32_0 = arith.constant 0 : i32
    %c0_i32_1 = arith.constant 0 : i32
    return %c0_i32, %c0_i32_0 : i32, i32
  }
  func.func @transform_2(%arg0: i32, %arg1: i32) -> (i32, i32) {
    %c0_i32 = arith.constant 0 : i32
    %c0_i32_0 = arith.constant 0 : i32
    %c0_i32_1 = arith.constant 0 : i32
    return %c0_i32, %c0_i32_0 : i32, i32
  }
  func.func @transform_3(%arg0: i32, %arg1: i32) -> (i32, i32, i32) {
    %c0_i32 = arith.constant 0 : i32
    %c0_i32_0 = arith.constant 0 : i32
    return %arg0, %c0_i32, %arg1 : i32, i32, i32
  }
  func.func @transform_4(%arg0: i32, %arg1: i32) -> (i32, i32, i32) {
    %c0_i32 = arith.constant 0 : i32
    %c0_i32_0 = arith.constant 0 : i32
    return %arg0, %arg1, %c0_i32 : i32, i32, i32
  }
}

</mosaic_0001>

<llo_original>
// kernel: tpu_custom_call.1
$region0: #{tpu_custom_call.1}
  #allocation0 [shape = 'u32[]', space=smem, size = 0x4, offset = 0x4, fixed_abs, tag = 'smem constant byte address 0x4 - core index']
  #allocation1 [shape = 'u32[72,128]{1,0:T(1,128)}', space=vmem, size = 0x9000, scoped, tag = 'internal scratch']
  #allocation2 [shape = 'f32[8,256]{1,0:T(8,128)}', space=vmem, size = 0x2000, scoped, tag = 'scratch operand']
  %s0 = inlined_call_operand.vmem [shape: f32[2,4,256], index: 0, kind: input, shape index: {}]
  %s1 = inlined_call_operand.vmem [shape: f32[16,4], index: 1, kind: input, shape index: {}]
  %s2 = inlined_call_operand.vmem [shape: f32[16,1], index: 2, kind: input, shape index: {}]
  %s3 = inlined_call_operand.hbm [shape: f32[2,4,256], index: 3, kind: output, shape index: {0}]
  %s4 = inlined_call_operand.hbm [shape: f32[2,256,256], index: 4, kind: output, shape index: {1}]
  %5 = xla_tuple %s3, %s4
  %s6 = sld [smem:[#allocation0]]
  $region53: #{tpu_custom_call.1} parent=0
    _
  %s8 = ssub.s32 1, %s6
  %s9 = scalar_select 0, %s8, %s6
  $region1: #{tpu_custom_call.1} parent=0
    #allocation3 [shape = 'u8[4096]{0}', space=vmem, size = 0x1000, scoped, tag = 'output window, operand 0']
    #allocation4 [shape = 's32[2]{0}', space=sflag, size = 0x8, scoped, tag = 'scoped memory for tpu_custom_call.1']
    #allocation5 [shape = 'u8[262144]{0}', space=vmem, size = 0x40000, scoped, tag = 'output window, operand 1']
    #allocation6 [shape = 's32[2]{0}', space=sflag, size = 0x8, scoped, tag = 'scoped memory for tpu_custom_call.1']
    %10 = vsyncpa [#allocation4], 0
    %s11 = scalar_lea.sflag [#allocation4], 1
    %12 = vsyncpa %s11, 0
    %13 = vsyncpa [#allocation6], 0
    %s14 = scalar_lea.sflag [#allocation6], 1
    %15 = vsyncpa %s14, 0
    loop: start=0, step=1, limit=6
    $region2: #{tpu_custom_call.1} parent=1 // loop_pre_header
      _
    $region3: #{tpu_custom_call.1} parent=1 // loop_header
      %s17 = sphi 0, %s21
      %p18 = scmp.ge.s32.totalorder %s17, 6
      %s24 = sphi 0, %s36
      %s25 = sphi 0, %s32
      %s26 = sphi 0, %s24
      %s27 = sphi 0, %s25
      %s28 = sphi 0, %s26
      %s29 = sphi 0, %s27
      %s39 = sphi 0, %s41
      %s42 = sphi 0, %s39
      %s43 = sphi 0, %s42
      %s59 = sphi 0, %s43
      %s63 = sphi 0, %s63
      %s65 = sphi 0, %s63
      %s66 = sphi 0, %s65
      %s80 = sphi 0, %s66
      %s84 = sphi 0, %s84
      %s86 = sphi 0, %s84
      %s87 = sphi 0, %s86
      %s101 = sphi 0, %s87
      %s109 = sphi 0, %s111
      %s112 = sphi 0, %s109
      %s113 = sphi 0, %s112
      %s129 = sphi 0, %s113
      %s137 = sphi 0, %s139
      %s140 = sphi 0, %s137
      %s141 = sphi 0, %s140
      %s157 = sphi 0, %s141
    $region4: #{tpu_custom_call.1} parent=1 // loop_header_branch
      %20 = sbr.rel (%p18) target = $region8
    $region5: #{tpu_custom_call.1} parent=1 // loop_body
      %s22 = ssub.s32 %s17, 1
      %s23 = ssub.s32 %s17, 2
      %s30 = sadd.s32 1, %s25
      %p31 = scmp.ge.s32.totalorder %s30, 2
      %s32 = scalar_select %p31, 0, %s30
      %s33 = sadd.s32 1, %s24
      %s34 = scalar_select %p31, %s33, %s24
      %p35 = scmp.ge.s32.totalorder %s34, 2
      %s36 = scalar_select %p35, 0, %s34
      %s37 = ssub.s32 %s24, %s36
      %p38 = scmp.eq.s32.totalorder %s37, 0
      %s40 = sadd.s32 %s39, 1
      %s41 = scalar_select %p38, %s39, %s40
      %p44 = pneg %p38
      %p45 = scmp.eq.s32.totalorder %s17, 3
      %p46 = por %p44, %p45
      %p47 = scmp.ne.s32.totalorder %s39, %s42
      %p48 = scmp.eq.s32.totalorder %s17, 0
      %p49 = por %p47, %p48
      %p50 = scmp.ne.s32.totalorder %s39, %s42
      %p51 = scmp.eq.s32.totalorder %s22, 3
      %p52 = por %p50, %p51
      %p53 = scmp.ne.s32.totalorder %s42, %s43
      %p54 = scmp.eq.s32.totalorder %s22, 0
      %p55 = por %p53, %p54
      %p56 = scmp.ne.s32.totalorder %s42, %s43
      %p57 = scmp.eq.s32.totalorder %s23, 3
      %p58 = por %p56, %p57
      %p60 = scmp.ne.s32.totalorder %s43, %s59
      %p61 = scmp.eq.s32.totalorder %s23, 0
      %p62 = por %p60, %p61
      %s64 = sadd.s32 %s63, 1
      %p67 = scmp.eq.s32.totalorder %s17, 3
      %p68 = scmp.ne.s32.totalorder %s63, %s65
      %p69 = scmp.eq.s32.totalorder %s17, 0
      %p70 = por %p68, %p69
      %p71 = scmp.ne.s32.totalorder %s63, %s65
      %p72 = scmp.eq.s32.totalorder %s22, 3
      %p73 = por %p71, %p72
      %p74 = scmp.ne.s32.totalorder %s65, %s66
      %p75 = scmp.eq.s32.totalorder %s22, 0
      %p76 = por %p74, %p75
      %p77 = scmp.ne.s32.totalorder %s65, %s66
      %p78 = scmp.eq.s32.totalorder %s23, 3
      %p79 = por %p77, %p78
      %p81 = scmp.ne.s32.totalorder %s66, %s80
      %p82 = scmp.eq.s32.totalorder %s23, 0
      %p83 = por %p81, %p82
      %s85 = sadd.s32 %s84, 1
      %p88 = scmp.eq.s32.totalorder %s17, 3
      %p89 = scmp.ne.s32.totalorder %s84, %s86
      %p90 = scmp.eq.s32.totalorder %s17, 0
      %p91 = por %p89, %p90
      %p92 = scmp.ne.s32.totalorder %s84, %s86
      %p93 = scmp.eq.s32.totalorder %s22, 3
      %p94 = por %p92, %p93
      %p95 = scmp.ne.s32.totalorder %s86, %s87
      %p96 = scmp.eq.s32.totalorder %s22, 0
      %p97 = por %p95, %p96
      %p98 = scmp.ne.s32.totalorder %s86, %s87
      %p99 = scmp.eq.s32.totalorder %s23, 3
      %p100 = por %p98, %p99
      %p102 = scmp.ne.s32.totalorder %s87, %s101
      %p103 = scmp.eq.s32.totalorder %s23, 0
      %p104 = por %p102, %p103
      %s105 = ssub.s32 %s24, %s36
      %s106 = ssub.s32 %s25, %s32
      %s107 = sor.u32 %s105, %s106
      %p108 = scmp.eq.s32.totalorder %s107, 0
      %s110 = sadd.s32 %s109, 1
      %s111 = scalar_select %p108, %s109, %s110
      %p114 = pneg %p108
      %p115 = scmp.eq.s32.totalorder %s17, 3
      %p116 = por %p114, %p115
      %p117 = scmp.ne.s32.totalorder %s109, %s112
      %p118 = scmp.eq.s32.totalorder %s17, 0
      %p119 = por %p117, %p118
      %p120 = scmp.ne.s32.totalorder %s109, %s112
      %p121 = scmp.eq.s32.totalorder %s22, 3
      %p122 = por %p120, %p121
      %p123 = scmp.ne.s32.totalorder %s112, %s113
      %p124 = scmp.eq.s32.totalorder %s22, 0
      %p125 = por %p123, %p124
      %p126 = scmp.ne.s32.totalorder %s112, %s113
      %p127 = scmp.eq.s32.totalorder %s23, 3
      %p128 = por %p126, %p127
      %p130 = scmp.ne.s32.totalorder %s113, %s129
      %p131 = scmp.eq.s32.totalorder %s23, 0
      %p132 = por %p130, %p131
      %s133 = ssub.s32 %s24, %s36
      %s134 = ssub.s32 %s25, %s32
      %s135 = sor.u32 %s133, %s134
      %p136 = scmp.eq.s32.totalorder %s135, 0
      %s138 = sadd.s32 %s137, 1
      %s139 = scalar_select %p136, %s137, %s138
      %p142 = pneg %p136
      %p143 = scmp.eq.s32.totalorder %s17, 3
      %p144 = por %p142, %p143
      %p145 = scmp.ne.s32.totalorder %s137, %s140
      %p146 = scmp.eq.s32.totalorder %s17, 0
      %p147 = por %p145, %p146
      %p148 = scmp.ne.s32.totalorder %s137, %s140
      %p149 = scmp.eq.s32.totalorder %s22, 3
      %p150 = por %p148, %p149
      %p151 = scmp.ne.s32.totalorder %s140, %s141
      %p152 = scmp.eq.s32.totalorder %s22, 0
      %p153 = por %p151, %p152
      %p154 = scmp.ne.s32.totalorder %s140, %s141
      %p155 = scmp.eq.s32.totalorder %s23, 3
      %p156 = por %p154, %p155
      %p158 = scmp.ne.s32.totalorder %s141, %s157
      %p159 = scmp.eq.s32.totalorder %s23, 0
      %p160 = por %p158, %p159
      %p161 = scmp.le.s32.totalorder 1, %s17
      %p162 = scmp.lt.s32.totalorder %s17, 5
      %p163 = pnand %p161, %p162
      %p164 = pneg %p163
      // Predicated region
      $region9: #{tpu_custom_call.1} parent=5 // pred_check
        _
      $region10: #{tpu_custom_call.1} parent=5 // pred_check_branch
        %166 = sbr.rel (%p163) target = $region12
      $region11: #{tpu_custom_call.1} parent=5 // pred_region
        %s167 = ssub.s32 %s17, 1
        // Predicated region
        $region13: #{tpu_custom_call.1} parent=11 // pred_check
          %p168 = pneg %p76
        $region14: #{tpu_custom_call.1} parent=11 // pred_check_branch
          %170 = sbr.rel (%p168) target = $region16
        $region15: #{tpu_custom_call.1} parent=11 // pred_region
          _
        $region16: #{tpu_custom_call.1} parent=11 // pred_fallthru
          _
        // Predicated region
        $region17: #{tpu_custom_call.1} parent=11 // pred_check
          %p171 = pneg %p97
        $region18: #{tpu_custom_call.1} parent=11 // pred_check_branch
          %173 = sbr.rel (%p171) target = $region20
        $region19: #{tpu_custom_call.1} parent=11 // pred_region
          _
        $region20: #{tpu_custom_call.1} parent=11 // pred_fallthru
          _
      $region12: #{tpu_custom_call.1} parent=5 // pred_fallthru
        _
      %p174 = scmp.lt.s32.totalorder %s17, 4
      // Predicated region
      $region21: #{tpu_custom_call.1} parent=5 // pred_check
        %p175 = pneg %p174
      $region22: #{tpu_custom_call.1} parent=5 // pred_check_branch
        %177 = sbr.rel (%p175) target = $region24
      $region23: #{tpu_custom_call.1} parent=5 // pred_region
        // Predicated region
        $region25: #{tpu_custom_call.1} parent=23 // pred_check
          %p178 = pneg %p49
        $region26: #{tpu_custom_call.1} parent=23 // pred_check_branch
          %180 = sbr.rel (%p178) target = $region28
        $region27: #{tpu_custom_call.1} parent=23 // pred_region
          %p181 = scmp.lt.s32.totalorder %s24, 1
          %s182 = scalar_select %p181, %s24, 1
          %s183 = smul.addr %s182, 2
          %s184 = smul.addr %s183, 4
          %s185 = scalar_lea.vmem %s0, %s184
        $region28: #{tpu_custom_call.1} parent=23 // pred_fallthru
          _
      $region24: #{tpu_custom_call.1} parent=5 // pred_fallthru
        _
      %p186 = scmp.le.s32.totalorder 1, %s17
      %p187 = scmp.lt.s32.totalorder %s17, 5
      %p188 = pnand %p186, %p187
      %p189 = pneg %p188
      // Predicated region
      $region29: #{tpu_custom_call.1} parent=5 // pred_check
        _
      $region30: #{tpu_custom_call.1} parent=5 // pred_check_branch
        %191 = sbr.rel (%p188) target = $region32
      $region31: #{tpu_custom_call.1} parent=5 // pred_region
        %s192 = ssub.s32 %s17, 1
        %p193 = scmp.lt.s32.totalorder %s26, 1
        %s194 = scalar_select %p193, %s26, 1
        %s195 = smul.addr %s194, 2
        %s196 = smul.addr %s195, 4
        %s197 = scalar_lea.vmem %s0, %s196
        %p198 = pneg %p55
        %p199 = pneg %p52
        %p200 = pneg %p76
        %p201 = pneg %p73
        %p202 = pneg %p97
        %p203 = pneg %p94
        %p204 = pneg %p125
        %p205 = pneg %p122
        %s206 = sand.u32 %s112, 1
        %s207 = scalar_lea.sflag [#allocation4], %s206
        %s208 = sand.u32 %s112, 1
        %s209 = smul.addr %s208, 4
        %s210 = scalar_lea.vmem [#allocation3], %s209
        %p211 = pneg %p153
        %p212 = pneg %p150
        %s213 = sand.u32 %s140, 1
        %s214 = scalar_lea.sflag [#allocation6], %s213
        %s215 = sand.u32 %s140, 1
        %s216 = smul.addr %s215, 256
        %s217 = scalar_lea.vmem [#allocation5], %s216
        %p218 = scmp.lt.s32.totalorder %s26, 1
        %s219 = scalar_select %p218, %s26, 1
        %s220 = smul.addr %s219, 2
        %s221 = smul.addr %s220, 4
        %s222 = scalar_lea.vmem %s0, %s221
        %s223 = smul.u32 16, %s27
        %s224 = smul.u32 %s27, 128
        %v225 = vld [vmem:[%s222] sm:$0xff]
        %v226 = vld [vmem:[%s1] sm:$0xff]
        %v227 = vld [vmem:[%s1 + $0x8] sm:$0xff]
        %v228 = vld [vmem:[%s2] sm:$0xff]
        %v229 = vld [vmem:[%s2 + $0x8] sm:$0xff]
        %231 = vset.pattern.permute.xlu0 0
        %232 = vperm.xlu0 %231, %v228
        %v233 = vpop.permute.xlu0 %232
        %236 = vset.pattern.permute.xlu0 0
        %237 = vperm.xlu0 %236, %v229
        %v238 = vpop.permute.xlu0 %237
        %241 = vst [vmem:[#allocation1] ss:$2 sm:$0xff] %v225
        %v242 = vld.sshfl [vmem:[#allocation1] sm:$0xff pattern:$0x75316420]
        %v243 = vld.sshfl [vmem:[#allocation1 + $0x8] sm:$0xff pattern:$0x75316420]
        %vm244 = vcmask 31744
        %v246 = vsel %vm244, %v226, 0
        %v249 = vsel %vm244, %v227, 0
        %vm251 = vcmask 1043456
        %v252 = vsel %vm251, %v242, 0
        %v254 = vsel %vm251, %v243, 0
        %256 = vmatpush.msra.mxu0 0.0
        %257 = vmatpush.msra.mxu0 0.0
        %258 = vmatpush.msra.mxu0 0.0
        %259 = vmatpush.msra.mxu0 0.0
        %260 = vmatpush.msra.mxu0 0.0
        %261 = vmatpush.msra.mxu0 0.0
        %262 = vmatpush.msra.mxu0 0.0
        %263 = vmatpush.msra.mxu0 0.0
        %264 = vmatpush.msra.mxu0 0.0
        %265 = vmatpush.msra.mxu0 0.0
        %266 = vmatpush.msra.mxu0 0.0
        %267 = vmatpush.msra.mxu0 0.0
        %268 = vmatpush.msra.mxu0 0.0
        %269 = vmatpush.msra.mxu0 0.0
        %270 = vmatpush.msra.mxu0 0.0
        %271 = vmatpush.msra.mxu0 %v252
        %272 = vmatmul.f32.gmra.mxu0 %v246
        %v273 = vpop.f32.mrf.mxu0
        %v274 = vadd.f32 %v233, %v273
        %275 = vmatmul.f32.gmra.mxu0 %v249
        %v276 = vpop.f32.mrf.mxu0
        %v277 = vadd.f32 %v238, %v276
        %278 = vdwg.mxu0
        %279 = vmatpush.msra.mxu0 0.0
        %280 = vmatpush.msra.mxu0 0.0
        %281 = vmatpush.msra.mxu0 0.0
        %282 = vmatpush.msra.mxu0 0.0
        %283 = vmatpush.msra.mxu0 0.0
        %284 = vmatpush.msra.mxu0 0.0
        %285 = vmatpush.msra.mxu0 0.0
        %286 = vmatpush.msra.mxu0 0.0
        %287 = vmatpush.msra.mxu0 0.0
        %288 = vmatpush.msra.mxu0 0.0
        %289 = vmatpush.msra.mxu0 0.0
        %290 = vmatpush.msra.mxu0 0.0
        %291 = vmatpush.msra.mxu0 0.0
        %292 = vmatpush.msra.mxu0 0.0
        %293 = vmatpush.msra.mxu0 0.0
        %294 = vmatpush.msra.mxu0 %v254
        %295 = vmatmul.f32.gmra.mxu0 %v246
        %v296 = vpop.f32.mrf.mxu0
        %v297 = vadd.f32 %v233, %v296
        %298 = vmatmul.f32.gmra.mxu0 %v249
        %v299 = vpop.f32.mrf.mxu0
        %v300 = vadd.f32 %v238, %v299
        %301 = vdwg.mxu0
        %302 = vst [vmem:[#allocation2] sm:$0xff] %v274
        %303 = vst [vmem:[#allocation2 + $0x8] sm:$0xff] %v297
        %s304 = sshra.s32 %s224, 7
        %s305 = sand.u32 %s224, 127
        %s306 = smul.addr %s304, 8
        %s307 = scalar_lea.vmem [#allocation2], %s306
        %v308 = vld [vmem:[%s307] sm:$0xff]
        %309 = vxpose.xlu0.b32.start [1/16] %v308, 128
        %310 = vxpose.xlu0.b32.cont [2/16] 0.0, 128
        %311 = vxpose.xlu0.b32.cont [3/16] 0.0, 128
        %312 = vxpose.xlu0.b32.cont [4/16] 0.0, 128
        %313 = vxpose.xlu0.b32.cont [5/16] 0.0, 128
        %314 = vxpose.xlu0.b32.cont [6/16] 0.0, 128
        %315 = vxpose.xlu0.b32.cont [7/16] 0.0, 128
        %316 = vxpose.xlu0.b32.cont [8/16] 0.0, 128
        %317 = vxpose.xlu0.b32.cont [9/16] 0.0, 128
        %318 = vxpose.xlu0.b32.cont [10/16] 0.0, 128
        %319 = vxpose.xlu0.b32.cont [11/16] 0.0, 128
        %320 = vxpose.xlu0.b32.cont [12/16] 0.0, 128
        %321 = vxpose.xlu0.b32.cont [13/16] 0.0, 128
        %322 = vxpose.xlu0.b32.cont [14/16] 0.0, 128
        %323 = vxpose.xlu0.b32.cont [15/16] 0.0, 128
        %324 = vxpose.xlu0.b32.end [16/16] 0.0, 128
        %v325 = vpop.trf.xlu0
        %v326 = vpop.trf.xlu0
        %v327 = vpop.trf.xlu0
        %v328 = vpop.trf.xlu0
        %v329 = vpop.trf.xlu0
        %v330 = vpop.trf.xlu0
        %v331 = vpop.trf.xlu0
        %v332 = vpop.trf.xlu0
        %v333 = vpop.trf.xlu0
        %v334 = vpop.trf.xlu0
        %v335 = vpop.trf.xlu0
        %v336 = vpop.trf.xlu0
        %v337 = vpop.trf.xlu0
        %v338 = vpop.trf.xlu0
        %v339 = vpop.trf.xlu0
        %v340 = vpop.trf.xlu0
        %vm341 = vcmask 64512
        %v343 = vsel %vm341, %v325, 0
        %v346 = vsel %vm341, %v326, 0
        %v349 = vsel %vm341, %v327, 0
        %v352 = vsel %vm341, %v328, 0
        %v355 = vsel %vm341, %v329, 0
        %v358 = vsel %vm341, %v330, 0
        %v361 = vsel %vm341, %v331, 0
        %v364 = vsel %vm341, %v332, 0
        %v367 = vsel %vm341, %v333, 0
        %v370 = vsel %vm341, %v334, 0
        %v373 = vsel %vm341, %v335, 0
        %v376 = vsel %vm341, %v336, 0
        %v379 = vsel %vm341, %v337, 0
        %v382 = vsel %vm341, %v338, 0
        %v385 = vsel %vm341, %v339, 0
        %v388 = vsel %vm341, %v340, 0
        %390 = vmatpush.msra.mxu0 0.0
        %391 = vmatpush.msra.mxu0 0.0
        %392 = vmatpush.msra.mxu0 0.0
        %393 = vmatpush.msra.mxu0 0.0
        %394 = vmatpush.msra.mxu0 0.0
        %395 = vmatpush.msra.mxu0 0.0
        %396 = vmatpush.msra.mxu0 0.0
        %397 = vmatpush.msra.mxu0 0.0
        %398 = vmatpush.msra.mxu0 0.0
        %399 = vmatpush.msra.mxu0 0.0
        %400 = vmatpush.msra.mxu0 0.0
        %401 = vmatpush.msra.mxu0 0.0
        %402 = vmatpush.msra.mxu0 0.0
        %403 = vmatpush.msra.mxu0 0.0
        %404 = vmatpush.msra.mxu0 0.0
        %405 = vmatpush.msra.mxu0 %v277
        %406 = vmatmul.f32.gmra.mxu0 %v343
        %v407 = vpop.f32.mrf.mxu0
        %v408 = vadd.f32 0.0, %v407
        %409 = vmatmul.f32.gmra.mxu0 %v346
        %v410 = vpop.f32.mrf.mxu0
        %v411 = vadd.f32 0.0, %v410
        %412 = vmatmul.f32.gmra.mxu0 %v349
        %v413 = vpop.f32.mrf.mxu0
        %v414 = vadd.f32 0.0, %v413
        %415 = vmatmul.f32.gmra.mxu0 %v352
        %v416 = vpop.f32.mrf.mxu0
        %v417 = vadd.f32 0.0, %v416
        %418 = vmatmul.f32.gmra.mxu0 %v355
        %v419 = vpop.f32.mrf.mxu0
        %v420 = vadd.f32 0.0, %v419
        %421 = vmatmul.f32.gmra.mxu0 %v358
        %v422 = vpop.f32.mrf.mxu0
        %v423 = vadd.f32 0.0, %v422
        %424 = vmatmul.f32.gmra.mxu0 %v361
        %v425 = vpop.f32.mrf.mxu0
        %v426 = vadd.f32 0.0, %v425
        %427 = vmatmul.f32.gmra.mxu0 %v364
        %v428 = vpop.f32.mrf.mxu0
        %v429 = vadd.f32 0.0, %v428
        %430 = vmatmul.f32.gmra.mxu0 %v367
        %v431 = vpop.f32.mrf.mxu0
        %v432 = vadd.f32 0.0, %v431
        %433 = vmatmul.f32.gmra.mxu0 %v370
        %v434 = vpop.f32.mrf.mxu0
        %v435 = vadd.f32 0.0, %v434
        %436 = vmatmul.f32.gmra.mxu0 %v373
        %v437 = vpop.f32.mrf.mxu0
        %v438 = vadd.f32 0.0, %v437
        %439 = vmatmul.f32.gmra.mxu0 %v376
        %v440 = vpop.f32.mrf.mxu0
        %v441 = vadd.f32 0.0, %v440
        %442 = vmatmul.f32.gmra.mxu0 %v379
        %v443 = vpop.f32.mrf.mxu0
        %v444 = vadd.f32 0.0, %v443
        %445 = vmatmul.f32.gmra.mxu0 %v382
        %v446 = vpop.f32.mrf.mxu0
        %v447 = vadd.f32 0.0, %v446
        %448 = vmatmul.f32.gmra.mxu0 %v385
        %v449 = vpop.f32.mrf.mxu0
        %v450 = vadd.f32 0.0, %v449
        %451 = vmatmul.f32.gmra.mxu0 %v388
        %v452 = vpop.f32.mrf.mxu0
        %v453 = vadd.f32 0.0, %v452
        %454 = vdwg.mxu0
        %455 = vmatpush.msra.mxu0 0.0
        %456 = vmatpush.msra.mxu0 0.0
        %457 = vmatpush.msra.mxu0 0.0
        %458 = vmatpush.msra.mxu0 0.0
        %459 = vmatpush.msra.mxu0 0.0
        %460 = vmatpush.msra.mxu0 0.0
        %461 = vmatpush.msra.mxu0 0.0
        %462 = vmatpush.msra.mxu0 0.0
        %463 = vmatpush.msra.mxu0 0.0
        %464 = vmatpush.msra.mxu0 0.0
        %465 = vmatpush.msra.mxu0 0.0
        %466 = vmatpush.msra.mxu0 0.0
        %467 = vmatpush.msra.mxu0 0.0
        %468 = vmatpush.msra.mxu0 0.0
        %469 = vmatpush.msra.mxu0 0.0
        %470 = vmatpush.msra.mxu0 %v300
        %471 = vmatmul.f32.gmra.mxu0 %v343
        %v472 = vpop.f32.mrf.mxu0
        %v473 = vadd.f32 0.0, %v472
        %474 = vmatmul.f32.gmra.mxu0 %v346
        %v475 = vpop.f32.mrf.mxu0
        %v476 = vadd.f32 0.0, %v475
        %477 = vmatmul.f32.gmra.mxu0 %v349
        %v478 = vpop.f32.mrf.mxu0
        %v479 = vadd.f32 0.0, %v478
        %480 = vmatmul.f32.gmra.mxu0 %v352
        %v481 = vpop.f32.mrf.mxu0
        %v482 = vadd.f32 0.0, %v481
        %483 = vmatmul.f32.gmra.mxu0 %v355
        %v484 = vpop.f32.mrf.mxu0
        %v485 = vadd.f32 0.0, %v484
        %486 = vmatmul.f32.gmra.mxu0 %v358
        %v487 = vpop.f32.mrf.mxu0
        %v488 = vadd.f32 0.0, %v487
        %489 = vmatmul.f32.gmra.mxu0 %v361
        %v490 = vpop.f32.mrf.mxu0
        %v491 = vadd.f32 0.0, %v490
        %492 = vmatmul.f32.gmra.mxu0 %v364
        %v493 = vpop.f32.mrf.mxu0
        %v494 = vadd.f32 0.0, %v493
        %495 = vmatmul.f32.gmra.mxu0 %v367
        %v496 = vpop.f32.mrf.mxu0
        %v497 = vadd.f32 0.0, %v496
        %498 = vmatmul.f32.gmra.mxu0 %v370
        %v499 = vpop.f32.mrf.mxu0
        %v500 = vadd.f32 0.0, %v499
        %501 = vmatmul.f32.gmra.mxu0 %v373
        %v502 = vpop.f32.mrf.mxu0
        %v503 = vadd.f32 0.0, %v502
        %504 = vmatmul.f32.gmra.mxu0 %v376
        %v505 = vpop.f32.mrf.mxu0
        %v506 = vadd.f32 0.0, %v505
        %507 = vmatmul.f32.gmra.mxu0 %v379
        %v508 = vpop.f32.mrf.mxu0
        %v509 = vadd.f32 0.0, %v508
        %510 = vmatmul.f32.gmra.mxu0 %v382
        %v511 = vpop.f32.mrf.mxu0
        %v512 = vadd.f32 0.0, %v511
        %513 = vmatmul.f32.gmra.mxu0 %v385
        %v514 = vpop.f32.mrf.mxu0
        %v515 = vadd.f32 0.0, %v514
        %516 = vmatmul.f32.gmra.mxu0 %v388
        %v517 = vpop.f32.mrf.mxu0
        %v518 = vadd.f32 0.0, %v517
        %519 = vdwg.mxu0
        %v520 = vmax.f32 %v408, %v473
        %521 = vmax.xlane.f32.xlu0 %v520
        %v522 = vpop.xlane.xlu0 %521
        %v523 = vmax.f32 %v411, %v476
        %524 = vmax.xlane.f32.xlu0 %v523
        %v525 = vpop.xlane.xlu0 %524
        %v526 = vmax.f32 %v414, %v479
        %527 = vmax.xlane.f32.xlu0 %v526
        %v528 = vpop.xlane.xlu0 %527
        %v529 = vmax.f32 %v417, %v482
        %530 = vmax.xlane.f32.xlu0 %v529
        %v531 = vpop.xlane.xlu0 %530
        %v532 = vmax.f32 %v420, %v485
        %533 = vmax.xlane.f32.xlu0 %v532
        %v534 = vpop.xlane.xlu0 %533
        %v535 = vmax.f32 %v423, %v488
        %536 = vmax.xlane.f32.xlu0 %v535
        %v537 = vpop.xlane.xlu0 %536
        %v538 = vmax.f32 %v426, %v491
        %539 = vmax.xlane.f32.xlu0 %v538
        %v540 = vpop.xlane.xlu0 %539
        %v541 = vmax.f32 %v429, %v494
        %542 = vmax.xlane.f32.xlu0 %v541
        %v543 = vpop.xlane.xlu0 %542
        %v544 = vmax.f32 %v432, %v497
        %545 = vmax.xlane.f32.xlu0 %v544
        %v546 = vpop.xlane.xlu0 %545
        %v547 = vmax.f32 %v435, %v500
        %548 = vmax.xlane.f32.xlu0 %v547
        %v549 = vpop.xlane.xlu0 %548
        %v550 = vmax.f32 %v438, %v503
        %551 = vmax.xlane.f32.xlu0 %v550
        %v552 = vpop.xlane.xlu0 %551
        %v553 = vmax.f32 %v441, %v506
        %554 = vmax.xlane.f32.xlu0 %v553
        %v555 = vpop.xlane.xlu0 %554
        %v556 = vmax.f32 %v444, %v509
        %557 = vmax.xlane.f32.xlu0 %v556
        %v558 = vpop.xlane.xlu0 %557
        %v559 = vmax.f32 %v447, %v512
        %560 = vmax.xlane.f32.xlu0 %v559
        %v561 = vpop.xlane.xlu0 %560
        %v562 = vmax.f32 %v450, %v515
        %563 = vmax.xlane.f32.xlu0 %v562
        %v564 = vpop.xlane.xlu0 %563
        %v565 = vmax.f32 %v453, %v518
        %566 = vmax.xlane.f32.xlu0 %v565
        %v567 = vpop.xlane.xlu0 %566
        %v568 = vsub.f32 %v408, %v522
        %v569 = vsub.f32 %v473, %v522
        %v570 = vsub.f32 %v411, %v525
        %v571 = vsub.f32 %v476, %v525
        %v572 = vsub.f32 %v414, %v528
        %v573 = vsub.f32 %v479, %v528
        %v574 = vsub.f32 %v417, %v531
        %v575 = vsub.f32 %v482, %v531
        %v576 = vsub.f32 %v420, %v534
        %v577 = vsub.f32 %v485, %v534
        %v578 = vsub.f32 %v423, %v537
        %v579 = vsub.f32 %v488, %v537
        %v580 = vsub.f32 %v426, %v540
        %v581 = vsub.f32 %v491, %v540
        %v582 = vsub.f32 %v429, %v543
        %v583 = vsub.f32 %v494, %v543
        %v584 = vsub.f32 %v432, %v546
        %v585 = vsub.f32 %v497, %v546
        %v586 = vsub.f32 %v435, %v549
        %v587 = vsub.f32 %v500, %v549
        %v588 = vsub.f32 %v438, %v552
        %v589 = vsub.f32 %v503, %v552
        %v590 = vsub.f32 %v441, %v555
        %v591 = vsub.f32 %v506, %v555
        %v592 = vsub.f32 %v444, %v558
        %v593 = vsub.f32 %v509, %v558
        %v594 = vsub.f32 %v447, %v561
        %v595 = vsub.f32 %v512, %v561
        %v596 = vsub.f32 %v450, %v564
        %v597 = vsub.f32 %v515, %v564
        %v598 = vsub.f32 %v453, %v567
        %v599 = vsub.f32 %v518, %v567
        %v600 = vmul.f32 %v568, 1.442695
        %v601 = vpow.pop %v600
        %v602 = vmul.f32 %v569, 1.442695
        %v603 = vpow.pop %v602
        %v604 = vmul.f32 %v570, 1.442695
        %v605 = vpow.pop %v604
        %v606 = vmul.f32 %v571, 1.442695
        %v607 = vpow.pop %v606
        %v608 = vmul.f32 %v572, 1.442695
        %v609 = vpow.pop %v608
        %v610 = vmul.f32 %v573, 1.442695
        %v611 = vpow.pop %v610
        %v612 = vmul.f32 %v574, 1.442695
        %v613 = vpow.pop %v612
        %v614 = vmul.f32 %v575, 1.442695
        %v615 = vpow.pop %v614
        %v616 = vmul.f32 %v576, 1.442695
        %v617 = vpow.pop %v616
        %v618 = vmul.f32 %v577, 1.442695
        %v619 = vpow.pop %v618
        %v620 = vmul.f32 %v578, 1.442695
        %v621 = vpow.pop %v620
        %v622 = vmul.f32 %v579, 1.442695
        %v623 = vpow.pop %v622
        %v624 = vmul.f32 %v580, 1.442695
        %v625 = vpow.pop %v624
        %v626 = vmul.f32 %v581, 1.442695
        %v627 = vpow.pop %v626
        %v628 = vmul.f32 %v582, 1.442695
        %v629 = vpow.pop %v628
        %v630 = vmul.f32 %v583, 1.442695
        %v631 = vpow.pop %v630
        %v632 = vmul.f32 %v584, 1.442695
        %v633 = vpow.pop %v632
        %v634 = vmul.f32 %v585, 1.442695
        %v635 = vpow.pop %v634
        %v636 = vmul.f32 %v586, 1.442695
        %v637 = vpow.pop %v636
        %v638 = vmul.f32 %v587, 1.442695
        %v639 = vpow.pop %v638
        %v640 = vmul.f32 %v588, 1.442695
        %v641 = vpow.pop %v640
        %v642 = vmul.f32 %v589, 1.442695
        %v643 = vpow.pop %v642
        %v644 = vmul.f32 %v590, 1.442695
        %v645 = vpow.pop %v644
        %v646 = vmul.f32 %v591, 1.442695
        %v647 = vpow.pop %v646
        %v648 = vmul.f32 %v592, 1.442695
        %v649 = vpow.pop %v648
        %v650 = vmul.f32 %v593, 1.442695
        %v651 = vpow.pop %v650
        %v652 = vmul.f32 %v594, 1.442695
        %v653 = vpow.pop %v652
        %v654 = vmul.f32 %v595, 1.442695
        %v655 = vpow.pop %v654
        %v656 = vmul.f32 %v596, 1.442695
        %v657 = vpow.pop %v656
        %v658 = vmul.f32 %v597, 1.442695
        %v659 = vpow.pop %v658
        %v660 = vmul.f32 %v598, 1.442695
        %v661 = vpow.pop %v660
        %v662 = vmul.f32 %v599, 1.442695
        %v663 = vpow.pop %v662
        %v664 = vadd.f32 %v601, %v603
        %665 = vadd.xlane.f32.xlu0 %v664
        %v666 = vpop.xlane.xlu0 %665
        %v667 = vadd.f32 %v605, %v607
        %668 = vadd.xlane.f32.xlu0 %v667
        %v669 = vpop.xlane.xlu0 %668
        %v670 = vadd.f32 %v609, %v611
        %671 = vadd.xlane.f32.xlu0 %v670
        %v672 = vpop.xlane.xlu0 %671
        %v673 = vadd.f32 %v613, %v615
        %674 = vadd.xlane.f32.xlu0 %v673
        %v675 = vpop.xlane.xlu0 %674
        %v676 = vadd.f32 %v617, %v619
        %677 = vadd.xlane.f32.xlu0 %v676
        %v678 = vpop.xlane.xlu0 %677
        %v679 = vadd.f32 %v621, %v623
        %680 = vadd.xlane.f32.xlu0 %v679
        %v681 = vpop.xlane.xlu0 %680
        %v682 = vadd.f32 %v625, %v627
        %683 = vadd.xlane.f32.xlu0 %v682
        %v684 = vpop.xlane.xlu0 %683
        %v685 = vadd.f32 %v629, %v631
        %686 = vadd.xlane.f32.xlu0 %v685
        %v687 = vpop.xlane.xlu0 %686
        %v688 = vadd.f32 %v633, %v635
        %689 = vadd.xlane.f32.xlu0 %v688
        %v690 = vpop.xlane.xlu0 %689
        %v691 = vadd.f32 %v637, %v639
        %692 = vadd.xlane.f32.xlu0 %v691
        %v693 = vpop.xlane.xlu0 %692
        %v694 = vadd.f32 %v641, %v643
        %695 = vadd.xlane.f32.xlu0 %v694
        %v696 = vpop.xlane.xlu0 %695
        %v697 = vadd.f32 %v645, %v647
        %698 = vadd.xlane.f32.xlu0 %v697
        %v699 = vpop.xlane.xlu0 %698
        %v700 = vadd.f32 %v649, %v651
        %701 = vadd.xlane.f32.xlu0 %v700
        %v702 = vpop.xlane.xlu0 %701
        %v703 = vadd.f32 %v653, %v655
        %704 = vadd.xlane.f32.xlu0 %v703
        %v705 = vpop.xlane.xlu0 %704
        %v706 = vadd.f32 %v657, %v659
        %707 = vadd.xlane.f32.xlu0 %v706
        %v708 = vpop.xlane.xlu0 %707
        %v709 = vadd.f32 %v661, %v663
        %710 = vadd.xlane.f32.xlu0 %v709
        %v711 = vpop.xlane.xlu0 %710
        %v712 = vrcp.pop %v666
        %v713 = vmul.f32 %v666, %v712
        %v714 = vsub.f32 1.0, %v713
        %v715 = vmul.f32 %v712, %v714
        %v716 = vadd.f32 %v712, %v715
        %vm717 = vweird.f32 %v666
        %vm718 = vweird.f32 %v712
        %vm719 = vmor %vm717, %vm718
        %v720 = vsel %vm719, %v712, %v716
        %v721 = vand.u32 2147483647, %v666
        %vm722 = vcmp.eq.f32.partialorder %v721, 8.507059e+37
        %v723 = vand.u32 %v666, 2147483648
        %v724 = vor.u32 1.1754944e-38, %v723
        %v725 = vsel %vm722, %v724, %v720
        %v726 = vrcp.pop %v669
        %v727 = vmul.f32 %v669, %v726
        %v728 = vsub.f32 1.0, %v727
        %v729 = vmul.f32 %v726, %v728
        %v730 = vadd.f32 %v726, %v729
        %vm731 = vweird.f32 %v669
        %vm732 = vweird.f32 %v726
        %vm733 = vmor %vm731, %vm732
        %v734 = vsel %vm733, %v726, %v730
        %v735 = vand.u32 2147483647, %v669
        %vm736 = vcmp.eq.f32.partialorder %v735, 8.507059e+37
        %v737 = vand.u32 %v669, 2147483648
        %v738 = vor.u32 1.1754944e-38, %v737
        %v739 = vsel %vm736, %v738, %v734
        %v740 = vrcp.pop %v672
        %v741 = vmul.f32 %v672, %v740
        %v742 = vsub.f32 1.0, %v741
        %v743 = vmul.f32 %v740, %v742
        %v744 = vadd.f32 %v740, %v743
        %vm745 = vweird.f32 %v672
        %vm746 = vweird.f32 %v740
        %vm747 = vmor %vm745, %vm746
        %v748 = vsel %vm747, %v740, %v744
        %v749 = vand.u32 2147483647, %v672
        %vm750 = vcmp.eq.f32.partialorder %v749, 8.507059e+37
        %v751 = vand.u32 %v672, 2147483648
        %v752 = vor.u32 1.1754944e-38, %v751
        %v753 = vsel %vm750, %v752, %v748
        %v754 = vrcp.pop %v675
        %v755 = vmul.f32 %v675, %v754
        %v756 = vsub.f32 1.0, %v755
        %v757 = vmul.f32 %v754, %v756
        %v758 = vadd.f32 %v754, %v757
        %vm759 = vweird.f32 %v675
        %vm760 = vweird.f32 %v754
        %vm761 = vmor %vm759, %vm760
        %v762 = vsel %vm761, %v754, %v758
        %v763 = vand.u32 2147483647, %v675
        %vm764 = vcmp.eq.f32.partialorder %v763, 8.507059e+37
        %v765 = vand.u32 %v675, 2147483648
        %v766 = vor.u32 1.1754944e-38, %v765
        %v767 = vsel %vm764, %v766, %v762
        %v768 = vrcp.pop %v678
        %v769 = vmul.f32 %v678, %v768
        %v770 = vsub.f32 1.0, %v769
        %v771 = vmul.f32 %v768, %v770
        %v772 = vadd.f32 %v768, %v771
        %vm773 = vweird.f32 %v678
        %vm774 = vweird.f32 %v768
        %vm775 = vmor %vm773, %vm774
        %v776 = vsel %vm775, %v768, %v772
        %v777 = vand.u32 2147483647, %v678
        %vm778 = vcmp.eq.f32.partialorder %v777, 8.507059e+37
        %v779 = vand.u32 %v678, 2147483648
        %v780 = vor.u32 1.1754944e-38, %v779
        %v781 = vsel %vm778, %v780, %v776
        %v782 = vrcp.pop %v681
        %v783 = vmul.f32 %v681, %v782
        %v784 = vsub.f32 1.0, %v783
        %v785 = vmul.f32 %v782, %v784
        %v786 = vadd.f32 %v782, %v785
        %vm787 = vweird.f32 %v681
        %vm788 = vweird.f32 %v782
        %vm789 = vmor %vm787, %vm788
        %v790 = vsel %vm789, %v782, %v786
        %v791 = vand.u32 2147483647, %v681
        %vm792 = vcmp.eq.f32.partialorder %v791, 8.507059e+37
        %v793 = vand.u32 %v681, 2147483648
        %v794 = vor.u32 1.1754944e-38, %v793
        %v795 = vsel %vm792, %v794, %v790
        %v796 = vrcp.pop %v684
        %v797 = vmul.f32 %v684, %v796
        %v798 = vsub.f32 1.0, %v797
        %v799 = vmul.f32 %v796, %v798
        %v800 = vadd.f32 %v796, %v799
        %vm801 = vweird.f32 %v684
        %vm802 = vweird.f32 %v796
        %vm803 = vmor %vm801, %vm802
        %v804 = vsel %vm803, %v796, %v800
        %v805 = vand.u32 2147483647, %v684
        %vm806 = vcmp.eq.f32.partialorder %v805, 8.507059e+37
        %v807 = vand.u32 %v684, 2147483648
        %v808 = vor.u32 1.1754944e-38, %v807
        %v809 = vsel %vm806, %v808, %v804
        %v810 = vrcp.pop %v687
        %v811 = vmul.f32 %v687, %v810
        %v812 = vsub.f32 1.0, %v811
        %v813 = vmul.f32 %v810, %v812
        %v814 = vadd.f32 %v810, %v813
        %vm815 = vweird.f32 %v687
        %vm816 = vweird.f32 %v810
        %vm817 = vmor %vm815, %vm816
        %v818 = vsel %vm817, %v810, %v814
        %v819 = vand.u32 2147483647, %v687
        %vm820 = vcmp.eq.f32.partialorder %v819, 8.507059e+37
        %v821 = vand.u32 %v687, 2147483648
        %v822 = vor.u32 1.1754944e-38, %v821
        %v823 = vsel %vm820, %v822, %v818
        %v824 = vrcp.pop %v690
        %v825 = vmul.f32 %v690, %v824
        %v826 = vsub.f32 1.0, %v825
        %v827 = vmul.f32 %v824, %v826
        %v828 = vadd.f32 %v824, %v827
        %vm829 = vweird.f32 %v690
        %vm830 = vweird.f32 %v824
        %vm831 = vmor %vm829, %vm830
        %v832 = vsel %vm831, %v824, %v828
        %v833 = vand.u32 2147483647, %v690
        %vm834 = vcmp.eq.f32.partialorder %v833, 8.507059e+37
        %v835 = vand.u32 %v690, 2147483648
        %v836 = vor.u32 1.1754944e-38, %v835
        %v837 = vsel %vm834, %v836, %v832
        %v838 = vrcp.pop %v693
        %v839 = vmul.f32 %v693, %v838
        %v840 = vsub.f32 1.0, %v839
        %v841 = vmul.f32 %v838, %v840
        %v842 = vadd.f32 %v838, %v841
        %vm843 = vweird.f32 %v693
        %vm844 = vweird.f32 %v838
        %vm845 = vmor %vm843, %vm844
        %v846 = vsel %vm845, %v838, %v842
        %v847 = vand.u32 2147483647, %v693
        %vm848 = vcmp.eq.f32.partialorder %v847, 8.507059e+37
        %v849 = vand.u32 %v693, 2147483648
        %v850 = vor.u32 1.1754944e-38, %v849
        %v851 = vsel %vm848, %v850, %v846
        %v852 = vrcp.pop %v696
        %v853 = vmul.f32 %v696, %v852
        %v854 = vsub.f32 1.0, %v853
        %v855 = vmul.f32 %v852, %v854
        %v856 = vadd.f32 %v852, %v855
        %vm857 = vweird.f32 %v696
        %vm858 = vweird.f32 %v852
        %vm859 = vmor %vm857, %vm858
        %v860 = vsel %vm859, %v852, %v856
        %v861 = vand.u32 2147483647, %v696
        %vm862 = vcmp.eq.f32.partialorder %v861, 8.507059e+37
        %v863 = vand.u32 %v696, 2147483648
        %v864 = vor.u32 1.1754944e-38, %v863
        %v865 = vsel %vm862, %v864, %v860
        %v866 = vrcp.pop %v699
        %v867 = vmul.f32 %v699, %v866
        %v868 = vsub.f32 1.0, %v867
        %v869 = vmul.f32 %v866, %v868
        %v870 = vadd.f32 %v866, %v869
        %vm871 = vweird.f32 %v699
        %vm872 = vweird.f32 %v866
        %vm873 = vmor %vm871, %vm872
        %v874 = vsel %vm873, %v866, %v870
        %v875 = vand.u32 2147483647, %v699
        %vm876 = vcmp.eq.f32.partialorder %v875, 8.507059e+37
        %v877 = vand.u32 %v699, 2147483648
        %v878 = vor.u32 1.1754944e-38, %v877
        %v879 = vsel %vm876, %v878, %v874
        %v880 = vrcp.pop %v702
        %v881 = vmul.f32 %v702, %v880
        %v882 = vsub.f32 1.0, %v881
        %v883 = vmul.f32 %v880, %v882
        %v884 = vadd.f32 %v880, %v883
        %vm885 = vweird.f32 %v702
        %vm886 = vweird.f32 %v880
        %vm887 = vmor %vm885, %vm886
        %v888 = vsel %vm887, %v880, %v884
        %v889 = vand.u32 2147483647, %v702
        %vm890 = vcmp.eq.f32.partialorder %v889, 8.507059e+37
        %v891 = vand.u32 %v702, 2147483648
        %v892 = vor.u32 1.1754944e-38, %v891
        %v893 = vsel %vm890, %v892, %v888
        %v894 = vrcp.pop %v705
        %v895 = vmul.f32 %v705, %v894
        %v896 = vsub.f32 1.0, %v895
        %v897 = vmul.f32 %v894, %v896
        %v898 = vadd.f32 %v894, %v897
        %vm899 = vweird.f32 %v705
        %vm900 = vweird.f32 %v894
        %vm901 = vmor %vm899, %vm900
        %v902 = vsel %vm901, %v894, %v898
        %v903 = vand.u32 2147483647, %v705
        %vm904 = vcmp.eq.f32.partialorder %v903, 8.507059e+37
        %v905 = vand.u32 %v705, 2147483648
        %v906 = vor.u32 1.1754944e-38, %v905
        %v907 = vsel %vm904, %v906, %v902
        %v908 = vrcp.pop %v708
        %v909 = vmul.f32 %v708, %v908
        %v910 = vsub.f32 1.0, %v909
        %v911 = vmul.f32 %v908, %v910
        %v912 = vadd.f32 %v908, %v911
        %vm913 = vweird.f32 %v708
        %vm914 = vweird.f32 %v908
        %vm915 = vmor %vm913, %vm914
        %v916 = vsel %vm915, %v908, %v912
        %v917 = vand.u32 2147483647, %v708
        %vm918 = vcmp.eq.f32.partialorder %v917, 8.507059e+37
        %v919 = vand.u32 %v708, 2147483648
        %v920 = vor.u32 1.1754944e-38, %v919
        %v921 = vsel %vm918, %v920, %v916
        %v922 = vrcp.pop %v711
        %v923 = vmul.f32 %v711, %v922
        %v924 = vsub.f32 1.0, %v923
        %v925 = vmul.f32 %v922, %v924
        %v926 = vadd.f32 %v922, %v925
        %vm927 = vweird.f32 %v711
        %vm928 = vweird.f32 %v922
        %vm929 = vmor %vm927, %vm928
        %v930 = vsel %vm929, %v922, %v926
        %v931 = vand.u32 2147483647, %v711
        %vm932 = vcmp.eq.f32.partialorder %v931, 8.507059e+37
        %v933 = vand.u32 %v711, 2147483648
        %v934 = vor.u32 1.1754944e-38, %v933
        %v935 = vsel %vm932, %v934, %v930
        %v936 = vmul.f32 %v601, %v725
        %v937 = vmul.f32 %v603, %v725
        %v938 = vmul.f32 %v605, %v739
        %v939 = vmul.f32 %v607, %v739
        %v940 = vmul.f32 %v609, %v753
        %v941 = vmul.f32 %v611, %v753
        %v942 = vmul.f32 %v613, %v767
        %v943 = vmul.f32 %v615, %v767
        %v944 = vmul.f32 %v617, %v781
        %v945 = vmul.f32 %v619, %v781
        %v946 = vmul.f32 %v621, %v795
        %v947 = vmul.f32 %v623, %v795
        %v948 = vmul.f32 %v625, %v809
        %v949 = vmul.f32 %v627, %v809
        %v950 = vmul.f32 %v629, %v823
        %v951 = vmul.f32 %v631, %v823
        %v952 = vmul.f32 %v633, %v837
        %v953 = vmul.f32 %v635, %v837
        %v954 = vmul.f32 %v637, %v851
        %v955 = vmul.f32 %v639, %v851
        %v956 = vmul.f32 %v641, %v865
        %v957 = vmul.f32 %v643, %v865
        %v958 = vmul.f32 %v645, %v879
        %v959 = vmul.f32 %v647, %v879
        %v960 = vmul.f32 %v649, %v893
        %v961 = vmul.f32 %v651, %v893
        %v962 = vmul.f32 %v653, %v907
        %v963 = vmul.f32 %v655, %v907
        %v964 = vmul.f32 %v657, %v921
        %v965 = vmul.f32 %v659, %v921
        %v966 = vmul.f32 %v661, %v935
        %v967 = vmul.f32 %v663, %v935
        %s968 = smul.addr %s304, 4
        %s969 = scalar_lea.vmem %s222, %s968
        %v970 = vld [vmem:[%s969] sm:$0xf]
        %971 = vst [vmem:[#allocation1] ss:$2 sm:$0xff] %v225
        %v972 = vld.sshfl [vmem:[#allocation1] sm:$0xff pattern:$0x75316420]
        %v973 = vld.sshfl [vmem:[#allocation1 + $0x8] sm:$0xff pattern:$0x75316420]
        %976 = vmatpush.xpose.msra.mxu0 %v966
        %977 = vmatpush.xpose.msra.mxu0 %v964
        %978 = vmatpush.xpose.msra.mxu0 %v962
        %979 = vmatpush.xpose.msra.mxu0 %v960
        %980 = vmatpush.xpose.msra.mxu0 %v958
        %981 = vmatpush.xpose.msra.mxu0 %v956
        %982 = vmatpush.xpose.msra.mxu0 %v954
        %983 = vmatpush.xpose.msra.mxu0 %v952
        %984 = vmatpush.xpose.msra.mxu0 %v950
        %985 = vmatpush.xpose.msra.mxu0 %v948
        %986 = vmatpush.xpose.msra.mxu0 %v946
        %987 = vmatpush.xpose.msra.mxu0 %v944
        %988 = vmatpush.xpose.msra.mxu0 %v942
        %989 = vmatpush.xpose.msra.mxu0 %v940
        %990 = vmatpush.xpose.msra.mxu0 %v938
        %991 = vmatpush.xpose.msra.mxu0 %v936
        %992 = vmatmul.f32.gmra.mxu0 %v972
        %v993 = vpop.f32.mrf.mxu0
        %v994 = vadd.f32 %v970, %v993
        %995 = vdwg.mxu0
        %996 = vmatpush.xpose.msra.mxu0 %v967
        %997 = vmatpush.xpose.msra.mxu0 %v965
        %998 = vmatpush.xpose.msra.mxu0 %v963
        %999 = vmatpush.xpose.msra.mxu0 %v961
        %1000 = vmatpush.xpose.msra.mxu0 %v959
        %1001 = vmatpush.xpose.msra.mxu0 %v957
        %1002 = vmatpush.xpose.msra.mxu0 %v955
        %1003 = vmatpush.xpose.msra.mxu0 %v953
        %1004 = vmatpush.xpose.msra.mxu0 %v951
        %1005 = vmatpush.xpose.msra.mxu0 %v949
        %1006 = vmatpush.xpose.msra.mxu0 %v947
        %1007 = vmatpush.xpose.msra.mxu0 %v945
        %1008 = vmatpush.xpose.msra.mxu0 %v943
        %1009 = vmatpush.xpose.msra.mxu0 %v941
        %1010 = vmatpush.xpose.msra.mxu0 %v939
        %1011 = vmatpush.xpose.msra.mxu0 %v937
        %1012 = vmatmul.f32.gmra.mxu0 %v973
        %v1013 = vpop.f32.mrf.mxu0
        %v1014 = vadd.f32 %v994, %v1013
        %1015 = vdwg.mxu0
        %v1016 = vmax.f32 %v1014, 0.0
        %1017 = vst [vmem:[%s210] sm:$0xf] %v1016
        %1018 = vst [vmem:[%s217] sm:$0xff] %v936
        %1019 = vst [vmem:[%s217 + $0x8] sm:$0xff] %v937
        %1020 = vst [vmem:[%s217 + $0x10] sm:$0xff] %v938
        %1021 = vst [vmem:[%s217 + $0x18] sm:$0xff] %v939
        %1022 = vst [vmem:[%s217 + $0x20] sm:$0xff] %v940
        %1023 = vst [vmem:[%s217 + $0x28] sm:$0xff] %v941
        %1024 = vst [vmem:[%s217 + $0x30] sm:$0xff] %v942
        %1025 = vst [vmem:[%s217 + $0x38] sm:$0xff] %v943
        %1026 = vst [vmem:[%s217 + $0x40] sm:$0xff] %v944
        %1027 = vst [vmem:[%s217 + $0x48] sm:$0xff] %v945
        %1028 = vst [vmem:[%s217 + $0x50] sm:$0xff] %v946
        %1029 = vst [vmem:[%s217 + $0x58] sm:$0xff] %v947
        %1030 = vst [vmem:[%s217 + $0x60] sm:$0xff] %v948
        %1031 = vst [vmem:[%s217 + $0x68] sm:$0xff] %v949
        %1032 = vst [vmem:[%s217 + $0x70] sm:$0xff] %v950
        %1033 = vst [vmem:[%s217 + $0x78] sm:$0xff] %v951
        %1034 = vst [vmem:[%s217 + $0x80] sm:$0xff] %v952
        %1035 = vst [vmem:[%s217 + $0x88] sm:$0xff] %v953
        %1036 = vst [vmem:[%s217 + $0x90] sm:$0xff] %v954
        %1037 = vst [vmem:[%s217 + $0x98] sm:$0xff] %v955
        %1038 = vst [vmem:[%s217 + $0xa0] sm:$0xff] %v956
        %1039 = vst [vmem:[%s217 + $0xa8] sm:$0xff] %v957
        %1040 = vst [vmem:[%s217 + $0xb0] sm:$0xff] %v958
        %1041 = vst [vmem:[%s217 + $0xb8] sm:$0xff] %v959
        %1042 = vst [vmem:[%s217 + $0xc0] sm:$0xff] %v960
        %1043 = vst [vmem:[%s217 + $0xc8] sm:$0xff] %v961
        %1044 = vst [vmem:[%s217 + $0xd0] sm:$0xff] %v962
        %1045 = vst [vmem:[%s217 + $0xd8] sm:$0xff] %v963
        %1046 = vst [vmem:[%s217 + $0xe0] sm:$0xff] %v964
        %1047 = vst [vmem:[%s217 + $0xe8] sm:$0xff] %v965
        %1048 = vst [vmem:[%s217 + $0xf0] sm:$0xff] %v966
        %1049 = vst [vmem:[%s217 + $0xf8] sm:$0xff] %v967
        %s1050 = sand.u32 %s112, 1
        %s1051 = scalar_lea.sflag [#allocation4], %s1050
        %s1052 = sand.u32 %s112, 1
        %s1053 = smul.addr %s1052, 4
        %s1054 = scalar_lea.vmem [#allocation3], %s1053
        %s1055 = sand.u32 %s140, 1
        %s1056 = scalar_lea.sflag [#allocation6], %s1055
        %s1057 = sand.u32 %s140, 1
        %s1058 = smul.addr %s1057, 256
        %s1059 = scalar_lea.vmem [#allocation5], %s1058
        // Predicated region
        $region33: #{tpu_custom_call.1} parent=31 // pred_check
          %p1060 = pneg %p122
        $region34: #{tpu_custom_call.1} parent=31 // pred_check_branch
          %1062 = sbr.rel (%p1060) target = $region36
        $region35: #{tpu_custom_call.1} parent=31 // pred_region
          %1064 = vsyncadd %s1051, 0
          %s1065 = smul.addr %s26, 2
          %s1066 = sadd.s32 %s27, %s1065
          %s1067 = smul.addr %s1066, 4
          %s1068 = scalar_lea.hbm %s3, %s1067
          %s1070 = sshll.u32 %s1054, 4
          %s1071 = int_to_ptr.vmem [resolvable:$true] %s1070
          %s1072 = sshll.u32 %s1068, 4
          %s1073 = int_to_ptr.hbm [resolvable:$true] %s1072
          %1075 = dma.vmem_to_hbm [thread:$0]  %s1071, 64, %s1073, %s1051
        $region36: #{tpu_custom_call.1} parent=31 // pred_fallthru
          _
        // Predicated region
        $region37: #{tpu_custom_call.1} parent=31 // pred_check
          %p1076 = pneg %p150
        $region38: #{tpu_custom_call.1} parent=31 // pred_check_branch
          %1078 = sbr.rel (%p1076) target = $region40
        $region39: #{tpu_custom_call.1} parent=31 // pred_region
          %s1079 = smul.u32 16, %s27
          %1081 = vsyncadd %s1056, 0
          %s1082 = smul.addr %s1079, 2
          %s1083 = smul.addr %s26, 64
          %s1084 = sadd.s32 %s1082, %s1083
          %s1085 = smul.addr %s1084, 8
          %s1086 = scalar_lea.hbm %s4, %s1085
          %s1087 = sshll.u32 %s1059, 4
          %s1088 = int_to_ptr.vmem [resolvable:$true] %s1087
          %s1089 = sshll.u32 %s1086, 4
          %s1090 = int_to_ptr.hbm [resolvable:$true] %s1089
          %1095 = dma.vmem_to_hbm [thread:$0]  %s1088, 4096, %s1090, %s1056, 256, 256, 16
        $region40: #{tpu_custom_call.1} parent=31 // pred_fallthru
          _
      $region32: #{tpu_custom_call.1} parent=5 // pred_fallthru
        _
      %p1096 = scmp.le.s32.totalorder 2, %s17
      // Predicated region
      $region41: #{tpu_custom_call.1} parent=5 // pred_check
        %p1097 = pneg %p1096
      $region42: #{tpu_custom_call.1} parent=5 // pred_check_branch
        %1099 = sbr.rel (%p1097) target = $region44
      $region43: #{tpu_custom_call.1} parent=5 // pred_region
        %s1100 = ssub.s32 %s17, 2
        // Predicated region
        $region45: #{tpu_custom_call.1} parent=43 // pred_check
          %p1101 = pneg %p128
        $region46: #{tpu_custom_call.1} parent=43 // pred_check_branch
          %1103 = sbr.rel (%p1101) target = $region48
        $region47: #{tpu_custom_call.1} parent=43 // pred_region
          %s1104 = sand.u32 %s113, 1
          %s1105 = scalar_lea.sflag [#allocation4], %s1104
          %s1106 = sand.u32 %s113, 1
          %s1107 = smul.addr %s1106, 4
          %s1108 = scalar_lea.vmem [#allocation3], %s1107
          %1110 = dma.done %s1105, 64
        $region48: #{tpu_custom_call.1} parent=43 // pred_fallthru
          _
        // Predicated region
        $region49: #{tpu_custom_call.1} parent=43 // pred_check
          %p1111 = pneg %p156
        $region50: #{tpu_custom_call.1} parent=43 // pred_check_branch
          %1113 = sbr.rel (%p1111) target = $region52
        $region51: #{tpu_custom_call.1} parent=43 // pred_region
          %s1114 = sand.u32 %s141, 1
          %s1115 = scalar_lea.sflag [#allocation6], %s1114
          %s1116 = sand.u32 %s141, 1
          %s1117 = smul.addr %s1116, 256
          %s1118 = scalar_lea.vmem [#allocation5], %s1117
          %1120 = dma.done %s1115, 4096
        $region52: #{tpu_custom_call.1} parent=43 // pred_fallthru
          _
      $region44: #{tpu_custom_call.1} parent=5 // pred_fallthru
        _
    $region6: #{tpu_custom_call.1} parent=1 // loop_footer
      %s21 = sadd.s32 1, %s17
    $region7: #{tpu_custom_call.1} parent=1 // loop_footer_branch
      %16 = sbr.rel target = $region3
    $region8: #{tpu_custom_call.1} parent=1 // loop_exit
      _
    %1121 = vsyncpa [#allocation4], 1
    %s1122 = scalar_lea.sflag [#allocation4], 1
    %1123 = vsyncpa %s1122, 1
    %1124 = vsyncpa [#allocation6], 1
    %s1125 = scalar_lea.sflag [#allocation6], 1
    %1126 = vsyncpa %s1125, 1

</llo_original>
